<compile_context>
chip_gen: v5e
topology: v5e:2x2
jax: 0.10.0
libtpu: 0.0.40
codegen_flags: <defaults>
</compile_context>

<pallas_src>
import functools

import jax
import jax.numpy as jnp
from jax.experimental import pallas as pl
from jax.experimental.pallas import tpu as pltpu


def _cell_mlp_kernel(x_ref, w1_ref, b1_ref, w2_ref, b2_ref, o_ref):
    # x_ref:  [bt, d_in]      (size-1 middle axis squeezed by the BlockSpec)
    # w1_ref: [d_in, d_hid]   bf16, pre-transposed in the wrapper
    # b1_ref: [1, d_hid]      f32
    # w2_ref: [d_hid, d_out]  bf16, pre-transposed in the wrapper
    # b2_ref: [1, d_out]      f32
    # o_ref:  [bt, d_out]     f32
    x = x_ref[...].astype(jnp.bfloat16)          # no-op if x is already bf16
    h = jnp.dot(x, w1_ref[...], preferred_element_type=jnp.float32)
    h = jnp.maximum(h + b1_ref[...], 0.0)        # bias + ReLU in f32 (VPU)
    # Dropout (inference) = identity.
    out = jnp.dot(h.astype(jnp.bfloat16), w2_ref[...],
                  preferred_element_type=jnp.float32)
    o_ref[...] = (out + b2_ref[...]).astype(o_ref.dtype)


def _round_up(n, m):
    return ((n + m - 1) // m) * m


def _pick_batch_tile(batch, b_tile):
    # 8-aligned tile, capped at b_tile.  ~half the batch so the grid has >= 2
    # steps whenever possible (lets ("parallel",) shard across v7x's 2 TCs).
    half = _round_up(max(1, (batch + 1) // 2), 8)
    return max(8, min(b_tile, half))


@functools.partial(jax.jit, static_argnames=("b_tile",))
def cell_forward(x, w1, b1, w2, b2, *, b_tile=4096):
    """x: [B, 1, D_in]; weights PyTorch-style [out, in]; biases [out]."""
    B, one, d_in = x.shape
    assert one == 1, "expected a size-1 middle axis (what torch .squeeze() removes)"
    d_hid, _ = w1.shape
    d_out, _ = w2.shape

    bt = _pick_batch_tile(B, b_tile)
    grid = (pl.cdiv(B, bt),)  # ragged boundary block handled by Pallas (no pad copy)

    # Grid-invariant params: cast + transpose ONCE here ([out,in] -> [in,out])
    # so the VMEM-resident MXU RHS needs no per-step relayout/transpose.
    w1b = w1.T.astype(jnp.bfloat16)
    w2b = w2.T.astype(jnp.bfloat16)
    b1r = b1.reshape(1, d_hid).astype(jnp.float32)
    b2r = b2.reshape(1, d_out).astype(jnp.float32)

    # Full blocks with constant index_map -> DMA'd once, VMEM-resident.
    const = lambda shape: pl.BlockSpec(shape, lambda i: (0,) * len(shape))

    x_bytes = x.dtype.itemsize
    weight_bytes = 2 * (d_in * d_hid + d_hid * d_out) + 4 * (d_hid + d_out)
    # Double-buffered x/out tiles + hidden activations + resident weights.
    vmem_est = (2 * bt * d_in * x_bytes + 2 * bt * d_out * 4
                + bt * d_hid * 4 + weight_bytes)
    vmem_limit = int(min(64 * 2**20, max(32 * 2**20, 2 * vmem_est)))

    cost = pl.CostEstimate(
        flops=2 * B * (d_in * d_hid + d_hid * d_out),
        transcendentals=0,
        bytes_accessed=B * (d_in * x_bytes + d_out * 4) + weight_bytes,
    )

    out = pl.pallas_call(
        _cell_mlp_kernel,
        out_shape=jax.ShapeDtypeStruct((B, d_out), jnp.float32),
        grid_spec=pl.GridSpec(
            grid=grid,
            in_specs=[
                # squeeze the size-1 middle axis via the BlockSpec (torch .squeeze())
                pl.BlockSpec((bt, None, d_in), lambda i: (i, 0, 0)),
                const((d_in, d_hid)),
                const((1, d_hid)),
                const((d_hid, d_out)),
                const((1, d_out)),
            ],
            out_specs=pl.BlockSpec((bt, d_out), lambda i: (i, 0)),
        ),
        compiler_params=pltpu.CompilerParams(
            dimension_semantics=("parallel",),
            vmem_limit_bytes=vmem_limit,
        ),
        cost_estimate=cost,
    )(x, w1b, b1r, w2b, b2r)
    return out


def _reference_forward_bf16(x, w1, b1, w2, b2):
    # Mirrors the kernel's precision: bf16 MXU operands, f32 accumulation.
    x2d = x[:, 0, :].astype(jnp.bfloat16)
    h = jnp.dot(x2d, w1.astype(jnp.bfloat16).T,
                preferred_element_type=jnp.float32) + b1
    h = jnp.maximum(h, 0.0)
    return jnp.dot(h.astype(jnp.bfloat16), w2.astype(jnp.bfloat16).T,
                   preferred_element_type=jnp.float32) + b2


def _reference_forward_f32(x, w1, b1, w2, b2):
    x2d = x[:, 0, :]
    h = jnp.maximum(x2d @ w1.T + b1, 0.0)
    return h @ w2.T + b2


if __name__ == "__main__":
    key = jax.random.PRNGKey(0)
    k_x, k_w1, k_b1, k_w2, k_b2, k_x2 = jax.random.split(key, 6)

    B, D_IN, D_HID, D_OUT = 2, 32, 64, 16

    # Deterministic synthetic parameters (PyTorch Linear stores W as [out, in]).
    x = jax.random.normal(k_x, (B, 1, D_IN), dtype=jnp.float32)
    w1 = jax.random.normal(k_w1, (D_HID, D_IN), dtype=jnp.float32) * 0.1
    b1 = jax.random.normal(k_b1, (D_HID,), dtype=jnp.float32) * 0.1
    w2 = jax.random.normal(k_w2, (D_OUT, D_HID), dtype=jnp.float32) * 0.1
    b2 = jax.random.normal(k_b2, (D_OUT,), dtype=jnp.float32) * 0.1

    out = jax.block_until_ready(cell_forward(x, w1, b1, w2, b2))
    assert out.shape == (B, D_OUT), out.shape
    ref_bf16 = _reference_forward_bf16(x, w1, b1, w2, b2)
    ref_f32 = _reference_forward_f32(x, w1, b1, w2, b2)
    assert jnp.allclose(out, ref_bf16, atol=2e-3, rtol=2e-3), "mismatch vs bf16 reference"
    assert jnp.allclose(out, ref_f32, atol=5e-2, rtol=0.0), "mismatch vs f32 reference"

    # Multi-step grid + ragged boundary block (44 rows, tile 16 -> 3 steps,
    # last block covers rows 32..47 with only 12 valid rows).
    x_big = jax.random.normal(k_x2, (44, 1, D_IN), dtype=jnp.float32)
    out_big = jax.block_until_ready(cell_forward(x_big, w1, b1, w2, b2, b_tile=16))
    ref_big = _reference_forward_bf16(x_big, w1, b1, w2, b2)
    assert out_big.shape == (44, D_OUT), out_big.shape
    assert jnp.allclose(out_big, ref_big, atol=2e-3, rtol=2e-3), "mismatch on tiled batch"

    print("KERNEL_OK")
</pallas_src>

<mosaic_0001>
module attributes {stable_mosaic.version = 11 : i64} {
  func.func @_cell_mlp_kernel(%arg0: i32, %arg1: memref<8x1x32xf32, #tpu.memory_space<vmem>>, %arg2: memref<32x64xbf16, #tpu.memory_space<vmem>>, %arg3: memref<1x64xf32, #tpu.memory_space<vmem>>, %arg4: memref<64x16xbf16, #tpu.memory_space<vmem>>, %arg5: memref<1x16xf32, #tpu.memory_space<vmem>>, %arg6: memref<8x16xf32, #tpu.memory_space<vmem>>) attributes {dimension_semantics = [#tpu.dimension_semantics<parallel>], iteration_bounds = array<i64: 1>, scalar_prefetch = 0 : i64, scratch_operands = 0 : i64, tpu.core_type = #tpu.core_type<tc>, window_params = [{transform_indices = @transform_0, window_bounds = array<i64: 8, 1, 32>}, {pipeline_mode = #tpu.pipeline_mode<synchronous>, transform_indices = @transform_1, window_bounds = array<i64: 32, 64>}, {pipeline_mode = #tpu.pipeline_mode<synchronous>, transform_indices = @transform_2, window_bounds = array<i64: 1, 64>}, {pipeline_mode = #tpu.pipeline_mode<synchronous>, transform_indices = @transform_3, window_bounds = array<i64: 64, 16>}, {pipeline_mode = #tpu.pipeline_mode<synchronous>, transform_indices = @transform_4, window_bounds = array<i64: 1, 16>}, {transform_indices = @transform_5, window_bounds = array<i64: 8, 16>}]} {
    %c0 = arith.constant 0 : index
    %c0_0 = arith.constant 0 : index
    %c0_1 = arith.constant 0 : index
    %0 = vector.load %arg1[%c0, %c0_0, %c0_1] : memref<8x1x32xf32, #tpu.memory_space<vmem>>, vector<8x1x32xf32>
    %1 = vector.shape_cast %0 : vector<8x1x32xf32> to vector<8x32xf32>
    %2 = arith.truncf %1 : vector<8x32xf32> to vector<8x32xbf16>
    %c0_2 = arith.constant 0 : index
    %c0_3 = arith.constant 0 : index
    %3 = vector.load %arg2[%c0_2, %c0_3] : memref<32x64xbf16, #tpu.memory_space<vmem>>, vector<32x64xbf16>
    %cst = arith.constant dense<0.000000e+00> : vector<8x64xf32>
    %4 = tpu.matmul %2, %3, %cst {dimension_numbers = #tpu.dot_dimension_numbers<[1], [0], [0], [1], [0, 0, 1, 1], [], []>} : vector<8x32xbf16>, vector<32x64xbf16>, vector<8x64xf32> -> vector<8x64xf32>
    %c0_4 = arith.constant 0 : index
    %c0_5 = arith.constant 0 : index
    %5 = vector.load %arg3[%c0_4, %c0_5] : memref<1x64xf32, #tpu.memory_space<vmem>>, vector<1x64xf32>
    %6 = vector.broadcast %5 : vector<1x64xf32> to vector<8x64xf32>
    %7 = arith.addf %4, %6 : vector<8x64xf32>
    %cst_6 = arith.constant 0.000000e+00 : f32
    %8 = vector.broadcast %cst_6 : f32 to vector<8x64xf32>
    %9 = arith.maximumf %7, %8 : vector<8x64xf32>
    %10 = arith.truncf %9 : vector<8x64xf32> to vector<8x64xbf16>
    %c0_7 = arith.constant 0 : index
    %c0_8 = arith.constant 0 : index
    %11 = vector.load %arg4[%c0_7, %c0_8] : memref<64x16xbf16, #tpu.memory_space<vmem>>, vector<64x16xbf16>
    %cst_9 = arith.constant dense<0.000000e+00> : vector<8x16xf32>
    %12 = tpu.matmul %10, %11, %cst_9 {dimension_numbers = #tpu.dot_dimension_numbers<[1], [0], [0], [1], [0, 0, 1, 1], [], []>} : vector<8x64xbf16>, vector<64x16xbf16>, vector<8x16xf32> -> vector<8x16xf32>
    %c0_10 = arith.constant 0 : index
    %c0_11 = arith.constant 0 : index
    %13 = vector.load %arg5[%c0_10, %c0_11] : memref<1x16xf32, #tpu.memory_space<vmem>>, vector<1x16xf32>
    %14 = vector.broadcast %13 : vector<1x16xf32> to vector<8x16xf32>
    %15 = arith.addf %12, %14 : vector<8x16xf32>
    %c0_12 = arith.constant 0 : index
    %c0_13 = arith.constant 0 : index
    %16 = vector.load %arg6[%c0_12, %c0_13] : memref<8x16xf32, #tpu.memory_space<vmem>>, vector<8x16xf32>
    tpu.vector_store %arg6[%c0_12, %c0_13], %15 {strides = array<i32>} : memref<8x16xf32, #tpu.memory_space<vmem>>, vector<8x16xf32>,
    return
  }
  func.func @transform_0(%arg0: i32) -> (i32, i32, i32) {
    %c0_i32 = arith.constant 0 : i32
    %c0_i32_0 = arith.constant 0 : i32
    %c0_i32_1 = arith.constant 0 : i32
    return %arg0, %c0_i32, %c0_i32_0 : i32, i32, i32
  }
  func.func @transform_1(%arg0: i32) -> (i32, i32) {
    %c0_i32 = arith.constant 0 : i32
    %c0_i32_0 = arith.constant 0 : i32
    %c0_i32_1 = arith.constant 0 : i32
    return %c0_i32, %c0_i32_0 : i32, i32
  }
  func.func @transform_2(%arg0: i32) -> (i32, i32) {
    %c0_i32 = arith.constant 0 : i32
    %c0_i32_0 = arith.constant 0 : i32
    %c0_i32_1 = arith.constant 0 : i32
    return %c0_i32, %c0_i32_0 : i32, i32
  }
  func.func @transform_3(%arg0: i32) -> (i32, i32) {
    %c0_i32 = arith.constant 0 : i32
    %c0_i32_0 = arith.constant 0 : i32
    %c0_i32_1 = arith.constant 0 : i32
    return %c0_i32, %c0_i32_0 : i32, i32
  }
  func.func @transform_4(%arg0: i32) -> (i32, i32) {
    %c0_i32 = arith.constant 0 : i32
    %c0_i32_0 = arith.constant 0 : i32
    %c0_i32_1 = arith.constant 0 : i32
    return %c0_i32, %c0_i32_0 : i32, i32
  }
  func.func @transform_5(%arg0: i32) -> (i32, i32) {
    %c0_i32 = arith.constant 0 : i32
    %c0_i32_0 = arith.constant 0 : i32
    return %arg0, %c0_i32 : i32, i32
  }
}

</mosaic_0001>

<llo_original>
// kernel: cell_forward.1
$region0: #{cell_forward.1}
  #allocation0 [shape = 'u32[]', space=smem, size = 0x4, offset = 0x4, fixed_abs, tag = 'smem constant byte address 0x4 - core index']
  #allocation1 [shape = 'u32[72,128]{1,0:T(1,128)}', space=vmem, size = 0x9000, scoped, tag = 'internal scratch']
  %s0 = inlined_call_operand.vmem [shape: f32[2,1,32], index: 0, kind: input, shape index: {}]
  %s1 = inlined_call_operand.vmem [shape: bf16[32,64], index: 1, kind: input, shape index: {}]
  %s2 = inlined_call_operand.vmem [shape: f32[1,64], index: 2, kind: input, shape index: {}]
  %s3 = inlined_call_operand.vmem [shape: bf16[64,16], index: 3, kind: input, shape index: {}]
  %s4 = inlined_call_operand.vmem [shape: f32[1,16], index: 4, kind: input, shape index: {}]
  %s5 = inlined_call_operand.hbm [shape: f32[2,16], index: 5, kind: output, shape index: {}]
  %s6 = sld [smem:[#allocation0]]
  $region30: #{cell_forward.1} parent=0
    _
  %s8 = ssub.s32 1, %s6
  %s9 = scalar_select 0, %s8, %s6
  $region1: #{cell_forward.1} parent=0
    #allocation2 [shape = 'u8[4096]{0}', space=vmem, size = 0x1000, scoped, tag = 'output window, operand 0, single buffered']
    #allocation3 [shape = 's32[1]{0}', space=sflag, size = 0x4, scoped, tag = 'scoped memory for cell_forward.1']
    %10 = vsyncpa [#allocation3], 0
    // Predicated region
    $region2: #{cell_forward.1} parent=1 // pred_check
      _
    $region3: #{cell_forward.1} parent=1 // pred_check_branch
      %12 = sbr.rel (0) target = $region5
    $region4: #{cell_forward.1} parent=1 // pred_region
      _
    $region5: #{cell_forward.1} parent=1 // pred_fallthru
      _
    // Predicated region
    $region6: #{cell_forward.1} parent=1 // pred_check
      _
    $region7: #{cell_forward.1} parent=1 // pred_check_branch
      %14 = sbr.rel (0) target = $region9
    $region8: #{cell_forward.1} parent=1 // pred_region
      _
    $region9: #{cell_forward.1} parent=1 // pred_fallthru
      _
    // Predicated region
    $region10: #{cell_forward.1} parent=1 // pred_check
      _
    $region11: #{cell_forward.1} parent=1 // pred_check_branch
      %16 = sbr.rel (0) target = $region13
    $region12: #{cell_forward.1} parent=1 // pred_region
      _
    $region13: #{cell_forward.1} parent=1 // pred_fallthru
      _
    // Predicated region
    $region14: #{cell_forward.1} parent=1 // pred_check
      _
    $region15: #{cell_forward.1} parent=1 // pred_check_branch
      %18 = sbr.rel (0) target = $region17
    $region16: #{cell_forward.1} parent=1 // pred_region
      _
    $region17: #{cell_forward.1} parent=1 // pred_fallthru
      _
    // Predicated region
    $region18: #{cell_forward.1} parent=1 // pred_check
      _
    $region19: #{cell_forward.1} parent=1 // pred_check_branch
      %20 = sbr.rel (0) target = $region21
    $region20: #{cell_forward.1} parent=1 // pred_region
      _
    $region21: #{cell_forward.1} parent=1 // pred_fallthru
      _
    %v22 = vld [vmem:[%s0] sm:$0x1]
    %v23 = vld [vmem:[%s0 + $0x1] sm:$0x1]
    %v24 = vld [vmem:[%s0 + $0x2] sm:$0x1]
    %v25 = vld [vmem:[%s0 + $0x3] sm:$0x1]
    %v26 = vld [vmem:[%s0 + $0x4] sm:$0x1]
    %v27 = vld [vmem:[%s0 + $0x5] sm:$0x1]
    %v28 = vld [vmem:[%s0 + $0x6] sm:$0x1]
    %v29 = vld [vmem:[%s0 + $0x7] sm:$0x1]
    %v30 = vpack.c.bf16 %v22, %v22
    %v31 = vpack.c.bf16 %v23, %v23
    %v32 = vpack.c.bf16 %v24, %v24
    %v33 = vpack.c.bf16 %v25, %v25
    %v34 = vpack.c.bf16 %v26, %v26
    %v35 = vpack.c.bf16 %v27, %v27
    %v36 = vpack.c.bf16 %v28, %v28
    %v37 = vpack.c.bf16 %v29, %v29
    %v38 = vld [vmem:[%s1] sm:$0xf]
    %v39 = vld [vmem:[%s1 + $0x4] sm:$0xf]
    %v40 = vld [vmem:[%s1 + $0x8] sm:$0xf]
    %v41 = vld [vmem:[%s1 + $0xc] sm:$0xf]
    %v42 = vld [vmem:[%s2] sm:$0x1]
    %v44 = vperm.slane %v42, 0
    %v54 = vunpack.c.l.b16 %v30
    %v55 = vunpack.c.l.b16 %v31
    %v56 = vunpack.c.l.b16 %v32
    %v57 = vunpack.c.l.b16 %v33
    %v58 = vunpack.c.l.b16 %v34
    %v59 = vunpack.c.l.b16 %v35
    %v60 = vunpack.c.l.b16 %v36
    %v61 = vunpack.c.l.b16 %v37
    %v62 = vrot.slane %v55, 7
    %vm63 = vcmask 1041409
    %v64 = vsel %vm63, %v62, %v54
    %v65 = vrot.slane %v56, 6
    %vm66 = vcmask 1042434
    %v67 = vsel %vm66, %v65, %v64
    %v68 = vrot.slane %v57, 5
    %vm69 = vcmask 1043459
    %v70 = vsel %vm69, %v68, %v67
    %v71 = vrot.slane %v58, 4
    %vm72 = vcmask 1044484
    %v73 = vsel %vm72, %v71, %v70
    %v74 = vrot.slane %v59, 3
    %vm75 = vcmask 1045509
    %v76 = vsel %vm75, %v74, %v73
    %v77 = vrot.slane %v60, 2
    %vm78 = vcmask 1046534
    %v79 = vsel %vm78, %v77, %v76
    %v80 = vrot.slane %v61, 1
    %vm81 = vcmask 1047559
    %v82 = vsel %vm81, %v80, %v79
    %v83 = vpack.c.b16 %v82, %v82
    %v88 = vunpack.c.l.b16 %v38
    %v89 = vunpack.c.l.b16 %v39
    %v90 = vunpack.c.l.b16 %v40
    %v91 = vunpack.c.l.b16 %v41
    %v92 = vpack.c.b16 %v89, %v88
    %v93 = vpack.c.b16 %v91, %v90
    %vm96 = vcmask 261120
    %v98 = vsel %vm96, %v83, 0
    %100 = vmatpush.bf16.msra.mxu0 0
    %101 = vmatpush.bf16.msra.mxu0 0
    %102 = vmatpush.bf16.msra.mxu0 0
    %103 = vmatpush.bf16.msra.mxu0 0
    %104 = vmatpush.bf16.msra.mxu0 0
    %105 = vmatpush.bf16.msra.mxu0 0
    %106 = vmatpush.bf16.msra.mxu0 %v93
    %107 = vmatpush.bf16.msra.mxu0 %v92
    %108 = vmatmul.bf16.gmra.mxu0 %v98
    %v109 = vpop.f32.mrf.mxu0
    %v110 = vadd.f32 %v44, %v109
    %v111 = vpop.f32.mrf.mxu0
    %112 = vdwg.mxu0
    %v113 = vmax.f32 %v110, 0.0
    %v114 = vpack.c.bf16 %v113, %v113
    %v115 = vld [vmem:[%s3] sm:$0xf]
    %v116 = vld [vmem:[%s3 + $0x4] sm:$0xf]
    %v117 = vld [vmem:[%s3 + $0x8] sm:$0xf]
    %v118 = vld [vmem:[%s3 + $0xc] sm:$0xf]
    %v119 = vld [vmem:[%s3 + $0x10] sm:$0xf]
    %v120 = vld [vmem:[%s3 + $0x14] sm:$0xf]
    %v121 = vld [vmem:[%s3 + $0x18] sm:$0xf]
    %v122 = vld [vmem:[%s3 + $0x1c] sm:$0xf]
    %v123 = vld [vmem:[%s4] sm:$0x1]
    %v125 = vperm.slane %v123, 0
    %v135 = vunpack.c.l.b16 %v115
    %v136 = vunpack.c.l.b16 %v116
    %v137 = vunpack.c.l.b16 %v117
    %v138 = vunpack.c.l.b16 %v118
    %v139 = vunpack.c.l.b16 %v119
    %v140 = vunpack.c.l.b16 %v120
    %v141 = vunpack.c.l.b16 %v121
    %v142 = vunpack.c.l.b16 %v122
    %v143 = vpack.c.b16 %v136, %v135
    %v144 = vpack.c.b16 %v138, %v137
    %v145 = vpack.c.b16 %v140, %v139
    %v146 = vpack.c.b16 %v142, %v141
    %vm151 = vcmask 523264
    %v153 = vsel %vm151, %v114, 0
    %155 = vmatpush.bf16.msra.mxu0 0
    %156 = vmatpush.bf16.msra.mxu0 0
    %157 = vmatpush.bf16.msra.mxu0 0
    %158 = vmatpush.bf16.msra.mxu0 0
    %159 = vmatpush.bf16.msra.mxu0 %v146
    %160 = vmatpush.bf16.msra.mxu0 %v145
    %161 = vmatpush.bf16.msra.mxu0 %v144
    %162 = vmatpush.bf16.msra.mxu0 %v143
    %163 = vmatmul.bf16.gmra.mxu0 %v153
    %v164 = vpop.f32.mrf.mxu0
    %v165 = vadd.f32 %v125, %v164
    %v166 = vpop.f32.mrf.mxu0
    %167 = vdwg.mxu0
    %vm168 = vcmask 130048
    %169 = vst.msk [vmem:[#allocation2] sm:$0xff] %vm168, %v165
    // Predicated region
    $region22: #{cell_forward.1} parent=1 // pred_check
      _
    $region23: #{cell_forward.1} parent=1 // pred_check_branch
      %171 = sbr.rel (0) target = $region25
    $region24: #{cell_forward.1} parent=1 // pred_region
      %173 = vsyncadd [#allocation3], 96
      %s174 = sshll.u32 [#allocation2], 4
      %s175 = int_to_ptr.vmem [resolvable:$true] %s174
      %s176 = sshll.u32 %s5, 4
      %s177 = int_to_ptr.hbm [resolvable:$true] %s176
      %182 = dma.vmem_to_hbm [thread:$0]  %s175, 32, %s177, [#allocation3], 32, 32, 2
    $region25: #{cell_forward.1} parent=1 // pred_fallthru
      _
    // Predicated region
    $region26: #{cell_forward.1} parent=1 // pred_check
      _
    $region27: #{cell_forward.1} parent=1 // pred_check_branch
      %184 = sbr.rel (0) target = $region29
    $region28: #{cell_forward.1} parent=1 // pred_region
      %186 = dma.done [#allocation3], 128
    $region29: #{cell_forward.1} parent=1 // pred_fallthru
      _
    %187 = vsyncpa [#allocation3], 1

</llo_original>
